<compile_context>
chip_gen: v7x
topology: tpu7x:2x2x1
jax: 0.10.0
libtpu: 0.0.40
codegen_flags: <defaults>
</compile_context>

<pallas_src>
import jax
import jax.numpy as jnp
from jax.experimental import pallas as pl
from jax.experimental.pallas import tpu as pltpu

IN_FEATURES = 94
HIDDEN = 94
HIDDEN_PAD = 128      # lane-dense hidden width (zero-padded, VMEM-only)
OUT_FEATURES = 8
MAX_TILE_B = 4096     # (4096*128*4 B x-tile + same for out) * 2 buffers ~= 8 MiB VMEM


def mlp_kernel(x_ref, w1_ref, b1_ref, w2_ref, b2_ref, o_ref):
    # bf16 MXU inputs, f32 accumulation; elementwise (bias, ReLU) stays in f32.
    x = x_ref[...].astype(jnp.bfloat16)                                # (TILE_B, 94)
    h = jnp.dot(x, w1_ref[...], preferred_element_type=jnp.float32)   # (TILE_B, 128)
    h = jnp.maximum(h + b1_ref[...], 0.0)                             # bias + ReLU (f32)
    # TODO(synk): nn.Dropout(0.2) is identity in eval mode; training-mode
    # stochastic masking is intentionally not reproduced here.
    o = jnp.dot(h.astype(jnp.bfloat16), w2_ref[...],
                preferred_element_type=jnp.float32) + b2_ref[...]      # (TILE_B, 8)
    o_ref[...] = o.astype(o_ref.dtype)


def _round_up(n, m):
    return ((n + m - 1) // m) * m


def _choose_tile_b(B):
    # Ensure >= 2 grid steps once B > 8 so the "parallel" batch axis really
    # splits across both TensorCores on v7x; cap at MAX_TILE_B to keep the
    # double-buffered tiles far inside the 32 MiB scoped-VMEM budget.
    b8 = _round_up(B, 8)
    half = _round_up((b8 + 1) // 2, 8)
    return max(8, min(MAX_TILE_B, half))


@jax.jit
def network_forward(x, w1, b1, w2, b2):
    B = x.shape[0]
    tile_b = _choose_tile_b(B)
    grid = (pl.cdiv(B, tile_b),)   # ragged tail: OOB output rows are dropped by Pallas

    # Zero-pad hidden 94 -> 128 and cast weights to bf16 (tiny, once per call).
    w1p = jnp.pad(w1, ((0, 0), (0, HIDDEN_PAD - HIDDEN))).astype(jnp.bfloat16)
    b1p = jnp.pad(b1, ((0, 0), (0, HIDDEN_PAD - HIDDEN)))
    w2p = jnp.pad(w2, ((0, HIDDEN_PAD - HIDDEN), (0, 0))).astype(jnp.bfloat16)

    flops = 2 * B * (IN_FEATURES * HIDDEN_PAD + HIDDEN_PAD * OUT_FEATURES)
    bytes_accessed = (B * IN_FEATURES * 4 + B * OUT_FEATURES * 4
                      + IN_FEATURES * HIDDEN_PAD * 2 + HIDDEN_PAD * 4
                      + HIDDEN_PAD * OUT_FEATURES * 2 + OUT_FEATURES * 4)

    out = pl.pallas_call(
        mlp_kernel,
        out_shape=jax.ShapeDtypeStruct((B, OUT_FEATURES), jnp.float32),
        grid=grid,
        in_specs=[
            pl.BlockSpec((tile_b, IN_FEATURES), lambda i: (i, 0)),       # x: streamed
            pl.BlockSpec((IN_FEATURES, HIDDEN_PAD), lambda i: (0, 0)),   # w1: resident
            pl.BlockSpec((1, HIDDEN_PAD), lambda i: (0, 0)),             # b1: resident
            pl.BlockSpec((HIDDEN_PAD, OUT_FEATURES), lambda i: (0, 0)),  # w2: resident
            pl.BlockSpec((1, OUT_FEATURES), lambda i: (0, 0)),           # b2: resident
        ],
        out_specs=pl.BlockSpec((tile_b, OUT_FEATURES), lambda i: (i, 0)),
        compiler_params=pltpu.CompilerParams(
            dimension_semantics=("parallel",),   # megacore sharding on v7x
            vmem_limit_bytes=32 << 20,           # v7x-safe scoped VMEM ceiling
        ),
        cost_estimate=pl.CostEstimate(flops=flops, transcendentals=0,
                                      bytes_accessed=bytes_accessed),
    )(x, w1p, b1p, w2p, b2)
    return out


def init_params(key):
    """Deterministic nn.Linear-style init: U(-1/sqrt(fan_in), 1/sqrt(fan_in))."""
    k1, k2, k3, k4 = jax.random.split(key, 4)
    bound1 = 1.0 / jnp.sqrt(94.0)
    bound2 = 1.0 / jnp.sqrt(94.0)
    # stored as (in, out) so the kernel does x @ W directly
    w1 = jax.random.uniform(k1, (IN_FEATURES, HIDDEN), jnp.float32, -bound1, bound1)
    b1 = jax.random.uniform(k2, (1, HIDDEN), jnp.float32, -bound1, bound1)
    w2 = jax.random.uniform(k3, (HIDDEN, OUT_FEATURES), jnp.float32, -bound2, bound2)
    b2 = jax.random.uniform(k4, (1, OUT_FEATURES), jnp.float32, -bound2, bound2)
    return w1, b1, w2, b2


def _reference(x, w1, b1, w2, b2):
    return jnp.maximum(x @ w1 + b1, 0.0) @ w2 + b2


if __name__ == "__main__":
    key = jax.random.PRNGKey(0)
    kx, kx2, kp = jax.random.split(key, 3)
    w1, b1, w2, b2 = init_params(kp)

    # bf16 MXU inputs -> tolerance loosened vs the previous f32-matmul version.
    TOL = 2e-2

    # Small, tile-aligned batch.
    B = 8
    x = jax.random.normal(kx, (B, IN_FEATURES), jnp.float32)
    out = jax.block_until_ready(network_forward(x, w1, b1, w2, b2))
    ref = _reference(x, w1, b1, w2, b2)
    assert out.shape == (B, OUT_FEATURES)
    assert jnp.allclose(out, ref, atol=TOL, rtol=TOL)

    # Ragged batch (exercises the non-divisible final grid block: B=20,
    # tile_b=16, grid=2; OOB rows of the last output block are dropped).
    B2 = 20
    x2 = jax.random.normal(kx2, (B2, IN_FEATURES), jnp.float32)
    out2 = jax.block_until_ready(network_forward(x2, w1, b1, w2, b2))
    ref2 = _reference(x2, w1, b1, w2, b2)
    assert out2.shape == (B2, OUT_FEATURES)
    assert jnp.allclose(out2, ref2, atol=TOL, rtol=TOL)

    print("KERNEL_OK")
</pallas_src>

<mosaic_0001>
module attributes {stable_mosaic.version = 11 : i64} {
  func.func @mlp_kernel(%arg0: i32, %arg1: memref<8x94xf32, #tpu.memory_space<vmem>>, %arg2: memref<94x128xbf16, #tpu.memory_space<vmem>>, %arg3: memref<1x128xf32, #tpu.memory_space<vmem>>, %arg4: memref<128x8xbf16, #tpu.memory_space<vmem>>, %arg5: memref<1x8xf32, #tpu.memory_space<vmem>>, %arg6: memref<8x8xf32, #tpu.memory_space<vmem>>) attributes {dimension_semantics = [#tpu.dimension_semantics<parallel>], iteration_bounds = array<i64: 1>, scalar_prefetch = 0 : i64, scratch_operands = 0 : i64, tpu.core_type = #tpu.core_type<tc>, window_params = [{transform_indices = @transform_0, window_bounds = array<i64: 8, 94>}, {pipeline_mode = #tpu.pipeline_mode<synchronous>, transform_indices = @transform_1, window_bounds = array<i64: 94, 128>}, {pipeline_mode = #tpu.pipeline_mode<synchronous>, transform_indices = @transform_2, window_bounds = array<i64: 1, 128>}, {pipeline_mode = #tpu.pipeline_mode<synchronous>, transform_indices = @transform_3, window_bounds = array<i64: 128, 8>}, {pipeline_mode = #tpu.pipeline_mode<synchronous>, transform_indices = @transform_4, window_bounds = array<i64: 1, 8>}, {transform_indices = @transform_5, window_bounds = array<i64: 8, 8>}]} {
    %c0 = arith.constant 0 : index
    %c0_0 = arith.constant 0 : index
    %0 = vector.load %arg1[%c0, %c0_0] : memref<8x94xf32, #tpu.memory_space<vmem>>, vector<8x94xf32>
    %1 = arith.truncf %0 : vector<8x94xf32> to vector<8x94xbf16>
    %c0_1 = arith.constant 0 : index
    %c0_2 = arith.constant 0 : index
    %2 = vector.load %arg2[%c0_1, %c0_2] : memref<94x128xbf16, #tpu.memory_space<vmem>>, vector<94x128xbf16>
    %cst = arith.constant dense<0.000000e+00> : vector<8x128xf32>
    %3 = tpu.matmul %1, %2, %cst {dimension_numbers = #tpu.dot_dimension_numbers<[1], [0], [0], [1], [0, 0, 1, 1], [], []>} : vector<8x94xbf16>, vector<94x128xbf16>, vector<8x128xf32> -> vector<8x128xf32>
    %c0_3 = arith.constant 0 : index
    %c0_4 = arith.constant 0 : index
    %4 = vector.load %arg3[%c0_3, %c0_4] : memref<1x128xf32, #tpu.memory_space<vmem>>, vector<1x128xf32>
    %5 = vector.broadcast %4 : vector<1x128xf32> to vector<8x128xf32>
    %6 = arith.addf %3, %5 : vector<8x128xf32>
    %cst_5 = arith.constant 0.000000e+00 : f32
    %7 = vector.broadcast %cst_5 : f32 to vector<8x128xf32>
    %8 = arith.maximumf %6, %7 : vector<8x128xf32>
    %9 = arith.truncf %8 : vector<8x128xf32> to vector<8x128xbf16>
    %c0_6 = arith.constant 0 : index
    %c0_7 = arith.constant 0 : index
    %10 = vector.load %arg4[%c0_6, %c0_7] : memref<128x8xbf16, #tpu.memory_space<vmem>>, vector<128x8xbf16>
    %cst_8 = arith.constant dense<0.000000e+00> : vector<8x8xf32>
    %11 = tpu.matmul %9, %10, %cst_8 {dimension_numbers = #tpu.dot_dimension_numbers<[1], [0], [0], [1], [0, 0, 1, 1], [], []>} : vector<8x128xbf16>, vector<128x8xbf16>, vector<8x8xf32> -> vector<8x8xf32>
    %c0_9 = arith.constant 0 : index
    %c0_10 = arith.constant 0 : index
    %12 = vector.load %arg5[%c0_9, %c0_10] : memref<1x8xf32, #tpu.memory_space<vmem>>, vector<1x8xf32>
    %13 = vector.broadcast %12 : vector<1x8xf32> to vector<8x8xf32>
    %14 = arith.addf %11, %13 : vector<8x8xf32>
    %c0_11 = arith.constant 0 : index
    %c0_12 = arith.constant 0 : index
    %15 = vector.load %arg6[%c0_11, %c0_12] : memref<8x8xf32, #tpu.memory_space<vmem>>, vector<8x8xf32>
    tpu.vector_store %arg6[%c0_11, %c0_12], %14 {strides = array<i32>} : memref<8x8xf32, #tpu.memory_space<vmem>>, vector<8x8xf32>,
    return
  }
  func.func @transform_0(%arg0: i32) -> (i32, i32) {
    %c0_i32 = arith.constant 0 : i32
    %c0_i32_0 = arith.constant 0 : i32
    return %arg0, %c0_i32 : i32, i32
  }
  func.func @transform_1(%arg0: i32) -> (i32, i32) {
    %c0_i32 = arith.constant 0 : i32
    %c0_i32_0 = arith.constant 0 : i32
    %c0_i32_1 = arith.constant 0 : i32
    return %c0_i32, %c0_i32_0 : i32, i32
  }
  func.func @transform_2(%arg0: i32) -> (i32, i32) {
    %c0_i32 = arith.constant 0 : i32
    %c0_i32_0 = arith.constant 0 : i32
    %c0_i32_1 = arith.constant 0 : i32
    return %c0_i32, %c0_i32_0 : i32, i32
  }
  func.func @transform_3(%arg0: i32) -> (i32, i32) {
    %c0_i32 = arith.constant 0 : i32
    %c0_i32_0 = arith.constant 0 : i32
    %c0_i32_1 = arith.constant 0 : i32
    return %c0_i32, %c0_i32_0 : i32, i32
  }
  func.func @transform_4(%arg0: i32) -> (i32, i32) {
    %c0_i32 = arith.constant 0 : i32
    %c0_i32_0 = arith.constant 0 : i32
    %c0_i32_1 = arith.constant 0 : i32
    return %c0_i32, %c0_i32_0 : i32, i32
  }
  func.func @transform_5(%arg0: i32) -> (i32, i32) {
    %c0_i32 = arith.constant 0 : i32
    %c0_i32_0 = arith.constant 0 : i32
    return %arg0, %c0_i32 : i32, i32
  }
}

</mosaic_0001>

<llo_original>
// kernel: network_forward.1
$region0: #{network_forward.1}
  #allocation0 [shape = 'u32[]', space=smem, size = 0x4, offset = 0x4, fixed_abs, tag = 'smem constant byte address 0x4 - core index']
  #allocation1 [shape = 'u32[144,128]{1,0:T(1,128)}', space=vmem, size = 0x12000, scoped, tag = 'internal scratch']
  %s0 = inlined_call_operand.vmem [shape: f32[8,94], index: 0, kind: input, shape index: {}]
  %s1 = inlined_call_operand.vmem [shape: bf16[94,128], index: 1, kind: input, shape index: {}]
  %s2 = inlined_call_operand.vmem [shape: f32[1,128], index: 2, kind: input, shape index: {}]
  %s3 = inlined_call_operand.vmem [shape: bf16[128,8], index: 3, kind: input, shape index: {}]
  %s4 = inlined_call_operand.vmem [shape: f32[1,8], index: 4, kind: input, shape index: {}]
  %s5 = inlined_call_operand.hbm [shape: f32[8,8], index: 5, kind: output, shape index: {}]
  %s6 = sld [smem:[#allocation0]]
  $region30: #{network_forward.1} parent=0
    _
  %s8 = ssub.s32 1, %s6
  %s9 = scalar_select 0, %s8, %s6
  $region1: #{network_forward.1} parent=0
    #allocation2 [shape = 'u8[4096]{0}', space=vmem, size = 0x1000, scoped, tag = 'output window, operand 0, single buffered']
    #allocation3 [shape = 's32[1]{0}', space=sflag, size = 0x4, scoped, tag = 'scoped memory for network_forward.1']
    %10 = vsyncpa [#allocation3], 0
    // Predicated region
    $region2: #{network_forward.1} parent=1 // pred_check
      _
    $region3: #{network_forward.1} parent=1 // pred_check_branch
      %12 = sbr.rel (0) target = $region5
    $region4: #{network_forward.1} parent=1 // pred_region
      _
    $region5: #{network_forward.1} parent=1 // pred_fallthru
      _
    // Predicated region
    $region6: #{network_forward.1} parent=1 // pred_check
      _
    $region7: #{network_forward.1} parent=1 // pred_check_branch
      %14 = sbr.rel (0) target = $region9
    $region8: #{network_forward.1} parent=1 // pred_region
      _
    $region9: #{network_forward.1} parent=1 // pred_fallthru
      _
    // Predicated region
    $region10: #{network_forward.1} parent=1 // pred_check
      _
    $region11: #{network_forward.1} parent=1 // pred_check_branch
      %16 = sbr.rel (0) target = $region13
    $region12: #{network_forward.1} parent=1 // pred_region
      _
    $region13: #{network_forward.1} parent=1 // pred_fallthru
      _
    // Predicated region
    $region14: #{network_forward.1} parent=1 // pred_check
      _
    $region15: #{network_forward.1} parent=1 // pred_check_branch
      %18 = sbr.rel (0) target = $region17
    $region16: #{network_forward.1} parent=1 // pred_region
      _
    $region17: #{network_forward.1} parent=1 // pred_fallthru
      _
    // Predicated region
    $region18: #{network_forward.1} parent=1 // pred_check
      _
    $region19: #{network_forward.1} parent=1 // pred_check_branch
      %20 = sbr.rel (0) target = $region21
    $region20: #{network_forward.1} parent=1 // pred_region
      _
    $region21: #{network_forward.1} parent=1 // pred_fallthru
      _
    %v22 = vld [vmem:[%s0] sm:$0xff]
    %v23 = vpack.c.bf16 %v22, %v22
    %v24 = vld [vmem:[%s1] sm:$0xf]
    %v25 = vld [vmem:[%s1 + $0x4] sm:$0xf]
    %v26 = vld [vmem:[%s1 + $0x8] sm:$0xf]
    %v27 = vld [vmem:[%s1 + $0xc] sm:$0xf]
    %v28 = vld [vmem:[%s1 + $0x10] sm:$0xf]
    %v29 = vld [vmem:[%s1 + $0x14] sm:$0xf]
    %v30 = vld [vmem:[%s1 + $0x18] sm:$0xf]
    %v31 = vld [vmem:[%s1 + $0x1c] sm:$0xf]
    %v32 = vld [vmem:[%s1 + $0x20] sm:$0xf]
    %v33 = vld [vmem:[%s1 + $0x24] sm:$0xf]
    %v34 = vld [vmem:[%s1 + $0x28] sm:$0xf]
    %v35 = vld [vmem:[%s1 + $0x2c] sm:$0x7]
    %v36 = vld [vmem:[%s2] sm:$0x1]
    %v38 = vlaneseq
    %v39 = vshrl.u32 %v38, 7
    %v40 = vsub.s32 0, %v39
    %v41 = vrot.slane %v36, %v40
    %v55 = vunpack.c.l.b16 %v24
    %v56 = vunpack.c.l.b16 %v25
    %v57 = vunpack.c.l.b16 %v26
    %v58 = vunpack.c.l.b16 %v27
    %v59 = vunpack.c.l.b16 %v28
    %v60 = vunpack.c.l.b16 %v29
    %v61 = vunpack.c.l.b16 %v30
    %v62 = vunpack.c.l.b16 %v31
    %v63 = vunpack.c.l.b16 %v32
    %v64 = vunpack.c.l.b16 %v33
    %v65 = vunpack.c.l.b16 %v34
    %v66 = vunpack.c.l.b16 %v35
    %v67 = vpack.c.b16 %v56, %v55
    %v68 = vpack.c.b16 %v58, %v57
    %v69 = vpack.c.b16 %v60, %v59
    %v70 = vpack.c.b16 %v62, %v61
    %v71 = vpack.c.b16 %v64, %v63
    %v72 = vpack.c.b16 %v66, %v65
    %vm78 = vcmask 769024
    %v80 = vsel %vm78, %v23, 0
    %vm82 = vcmask 1046528
    %v84 = vsel %vm82, %v72, 0
    %86 = vmatprep.subr.bf16.mxu0 0
    %87 = vmatpush1.bf16.msra.mxu0 %v67
    %88 = vmatprep.subr.bf16.mxu0 0
    %89 = vmatpush1.bf16.msra.mxu0 %v68
    %90 = vmatprep.subr.bf16.mxu0 0
    %91 = vmatpush1.bf16.msra.mxu0 %v69
    %92 = vmatprep.subr.bf16.mxu0 0
    %93 = vmatpush1.bf16.msra.mxu0 %v70
    %94 = vmatprep.subr.bf16.mxu0 0
    %95 = vmatpush1.bf16.msra.mxu0 %v71
    %96 = vmatprep.subr.bf16.mxu0 0
    %97 = vmatpush1.bf16.msra.mxu0 %v84
    %98 = vmatprep.subr.bf16.mxu0 0
    %99 = vmatpush1.bf16.msra.mxu0 0
    %100 = vmatprep.subr.bf16.mxu0 0
    %101 = vmatpush1.bf16.msra.mxu0 0
    %102 = vmatprep.subr.bf16.mxu0 0
    %103 = vmatpush1.bf16.msra.mxu0 0
    %104 = vmatprep.subr.bf16.mxu0 0
    %105 = vmatpush1.bf16.msra.mxu0 0
    %106 = vmatprep.subr.bf16.mxu0 0
    %107 = vmatpush1.bf16.msra.mxu0 0
    %108 = vmatprep.subr.bf16.mxu0 0
    %109 = vmatpush1.bf16.msra.mxu0 0
    %110 = vmatprep.subr.bf16.mxu0 0
    %111 = vmatpush1.bf16.msra.mxu0 0
    %112 = vmatprep.subr.bf16.mxu0 0
    %113 = vmatpush1.bf16.msra.mxu0 0
    %114 = vmatprep.subr.bf16.mxu0 0
    %115 = vmatpush1.bf16.msra.mxu0 0
    %116 = vmatprep.subr.bf16.mxu0 0
    %117 = vmatpush1.bf16.msra.mxu0 0
    %118 = vmatprep.mubr.bf16.mxu0 0
    %119 = vmatmul.mubr.bf16.gmra.mrb[0].mxu0 %v80
    %v120 = vpop.f32.mrb[0].mxu0
    %v121 = vadd.f32 %v41, %v120
    %v122 = vpop.f32.mrb[0].mxu0
    %v123 = vpop.f32.mrb[0].mxu0
    %v124 = vpop.f32.mrb[0].mxu0
    %125 = vdwg.mxu0
    %v126 = vmax.f32 %v121, 0.0
    %v127 = vpack.c.bf16 %v126, %v126
    %v128 = vld [vmem:[%s3] sm:$0xf]
    %v129 = vld [vmem:[%s3 + $0x4] sm:$0xf]
    %v130 = vld [vmem:[%s3 + $0x8] sm:$0xf]
    %v131 = vld [vmem:[%s3 + $0xc] sm:$0xf]
    %v132 = vld [vmem:[%s3 + $0x10] sm:$0xf]
    %v133 = vld [vmem:[%s3 + $0x14] sm:$0xf]
    %v134 = vld [vmem:[%s3 + $0x18] sm:$0xf]
    %v135 = vld [vmem:[%s3 + $0x1c] sm:$0xf]
    %v136 = vld [vmem:[%s3 + $0x20] sm:$0xf]
    %v137 = vld [vmem:[%s3 + $0x24] sm:$0xf]
    %v138 = vld [vmem:[%s3 + $0x28] sm:$0xf]
    %v139 = vld [vmem:[%s3 + $0x2c] sm:$0xf]
    %v140 = vld [vmem:[%s3 + $0x30] sm:$0xf]
    %v141 = vld [vmem:[%s3 + $0x34] sm:$0xf]
    %v142 = vld [vmem:[%s3 + $0x38] sm:$0xf]
    %v143 = vld [vmem:[%s3 + $0x3c] sm:$0xf]
    %v144 = vld [vmem:[%s4] sm:$0x1]
    %v146 = vlaneseq
    %v147 = vshrl.u32 %v146, 7
    %v148 = vsub.s32 0, %v147
    %v149 = vrot.slane %v144, %v148
    %v167 = vunpack.c.l.b16 %v128
    %v168 = vunpack.c.l.b16 %v129
    %v169 = vunpack.c.l.b16 %v130
    %v170 = vunpack.c.l.b16 %v131
    %v171 = vunpack.c.l.b16 %v132
    %v172 = vunpack.c.l.b16 %v133
    %v173 = vunpack.c.l.b16 %v134
    %v174 = vunpack.c.l.b16 %v135
    %v175 = vunpack.c.l.b16 %v136
    %v176 = vunpack.c.l.b16 %v137
    %v177 = vunpack.c.l.b16 %v138
    %v178 = vunpack.c.l.b16 %v139
    %v179 = vunpack.c.l.b16 %v140
    %v180 = vunpack.c.l.b16 %v141
    %v181 = vunpack.c.l.b16 %v142
    %v182 = vunpack.c.l.b16 %v143
    %v183 = vpack.c.b16 %v168, %v167
    %v184 = vpack.c.b16 %v170, %v169
    %v185 = vpack.c.b16 %v172, %v171
    %v186 = vpack.c.b16 %v174, %v173
    %v187 = vpack.c.b16 %v176, %v175
    %v188 = vpack.c.b16 %v178, %v177
    %v189 = vpack.c.b16 %v180, %v179
    %v190 = vpack.c.b16 %v182, %v181
    %199 = vmatprep.subr.bf16.mxu0 0
    %200 = vmatpush1.bf16.msra.mxu0 %v183
    %201 = vmatprep.subr.bf16.mxu0 0
    %202 = vmatpush1.bf16.msra.mxu0 %v184
    %203 = vmatprep.subr.bf16.mxu0 0
    %204 = vmatpush1.bf16.msra.mxu0 %v185
    %205 = vmatprep.subr.bf16.mxu0 0
    %206 = vmatpush1.bf16.msra.mxu0 %v186
    %207 = vmatprep.subr.bf16.mxu0 0
    %208 = vmatpush1.bf16.msra.mxu0 %v187
    %209 = vmatprep.subr.bf16.mxu0 0
    %210 = vmatpush1.bf16.msra.mxu0 %v188
    %211 = vmatprep.subr.bf16.mxu0 0
    %212 = vmatpush1.bf16.msra.mxu0 %v189
    %213 = vmatprep.subr.bf16.mxu0 0
    %214 = vmatpush1.bf16.msra.mxu0 %v190
    %215 = vmatprep.subr.bf16.mxu0 0
    %216 = vmatpush1.bf16.msra.mxu0 0
    %217 = vmatprep.subr.bf16.mxu0 0
    %218 = vmatpush1.bf16.msra.mxu0 0
    %219 = vmatprep.subr.bf16.mxu0 0
    %220 = vmatpush1.bf16.msra.mxu0 0
    %221 = vmatprep.subr.bf16.mxu0 0
    %222 = vmatpush1.bf16.msra.mxu0 0
    %223 = vmatprep.subr.bf16.mxu0 0
    %224 = vmatpush1.bf16.msra.mxu0 0
    %225 = vmatprep.subr.bf16.mxu0 0
    %226 = vmatpush1.bf16.msra.mxu0 0
    %227 = vmatprep.subr.bf16.mxu0 0
    %228 = vmatpush1.bf16.msra.mxu0 0
    %229 = vmatprep.subr.bf16.mxu0 0
    %230 = vmatpush1.bf16.msra.mxu0 0
    %231 = vmatprep.mubr.bf16.mxu0 0
    %232 = vmatmul.mubr.bf16.gmra.mrb[0].mxu0 %v127
    %v233 = vpop.f32.mrb[0].mxu0
    %v234 = vadd.f32 %v149, %v233
    %v235 = vpop.f32.mrb[0].mxu0
    %v236 = vpop.f32.mrb[0].mxu0
    %v237 = vpop.f32.mrb[0].mxu0
    %238 = vdwg.mxu0
    %vm239 = vcmask 64512
    %240 = vst.msk [vmem:[#allocation2] sm:$0xff] %vm239, %v234
    // Predicated region
    $region22: #{network_forward.1} parent=1 // pred_check
      _
    $region23: #{network_forward.1} parent=1 // pred_check_branch
      %242 = sbr.rel (0) target = $region25
    $region24: #{network_forward.1} parent=1 // pred_region
      %s244 = ssub.s32 128, 128
      %245 = vsyncadd [#allocation3], %s244
      %s247 = sshll.u32 [#allocation2], 4
      %s248 = int_to_ptr.vmem [resolvable:$true] %s247
      %250 = dma.vmem_to_hbm [thread:$0]  %s248, 128, %s5, [#allocation3]
    $region25: #{network_forward.1} parent=1 // pred_fallthru
      _
    // Predicated region
    $region26: #{network_forward.1} parent=1 // pred_check
      _
    $region27: #{network_forward.1} parent=1 // pred_check_branch
      %252 = sbr.rel (0) target = $region29
    $region28: #{network_forward.1} parent=1 // pred_region
      %253 = dma.done [#allocation3], 128
    $region29: #{network_forward.1} parent=1 // pred_fallthru
      _
    %254 = vsyncpa [#allocation3], 1

</llo_original>
